<compile_context>
chip_gen: v6e
topology: v6e:2x2x1
jax: 0.10.0
libtpu: 0.0.40
codegen_flags: <defaults>
</compile_context>

<pallas_src>
import functools

import jax
import jax.numpy as jnp
from jax.experimental import pallas as pl
from jax.experimental.pallas import tpu as pltpu

_LANES = 128
_OUT_ROWS = 8


def _round_up(x, m):
    return (x + m - 1) // m * m


def _sublane_multiple(dtype):
    itemsize = jnp.dtype(dtype).itemsize
    if itemsize >= 4:
        return 8
    if itemsize == 2:
        return 16
    return 32


def _l2_partial_kernel(out_ref, tgt_ref, part_ref, *, channels, rows,
                       out_rows, total_rows, mask_rows):
    # out_ref / tgt_ref: (C, rows, 128) VMEM tiles (batch & hw-tile dims squeezed).
    # part_ref:          (out_rows, 128) lane-dense partial-sum output block.

    # Channel reduce, channel-by-channel: one (rows,128) f32 temporary live at
    # a time (pure VPU elementwise adds; C sits on a non-tiled dim).
    d = out_ref[0].astype(jnp.float32) - tgt_ref[0].astype(jnp.float32)
    sq = d * d
    for c in range(1, channels):
        d = out_ref[c].astype(jnp.float32) - tgt_ref[c].astype(jnp.float32)
        sq = sq + d * d

    if mask_rows:
        # The last hw-tile may extend past the real data (Pallas pads the
        # block with unspecified values); zero those rows before sqrt so
        # garbage never reaches the sum (select, so NaNs don't propagate).
        t = pl.program_id(1)
        valid = total_rows - t * rows
        row_ids = jax.lax.broadcasted_iota(jnp.int32, (rows, _LANES), 0)
        sq = jnp.where(row_ids < valid, sq, 0.0)

    norms = jnp.sqrt(sq)  # per-pixel L2 norm (zero-padded pixels stay 0)

    # Sublane fold: grouped reduce over the leading (non-tiled) axis — compact
    # code, short VPU dependence chain. Pad the tail group with zeros only in
    # the rare ragged single-tile case.
    padded_rows = _round_up(rows, out_rows)
    if padded_rows != rows:
        norms = jnp.concatenate(
            [norms, jnp.zeros((padded_rows - rows, _LANES), jnp.float32)],
            axis=0)
    groups = padded_rows // out_rows
    if groups == 1:
        part = norms
    else:
        part = jnp.sum(norms.reshape(groups, out_rows, _LANES), axis=0)
    part_ref[...] = part


def l2_loss(output, target, *, pipeline_buffer_bytes=16 * 1024 * 1024,
            max_rows_per_tile=4096):
    """Returns [L2, EPE], matching L2Loss.forward(output, target)."""
    assert output.shape == target.shape
    N, C, H, W = output.shape
    HW = H * W
    itemsize = jnp.dtype(output.dtype).itemsize
    sub = _sublane_multiple(output.dtype)

    hw_rows = -(-HW // _LANES)          # pixels packed 128 per lane row

    # Minimal padding: only when HW is not a multiple of 128 (zero pad is safe:
    # diff=0 -> norm=0; the mean divides by the true N*HW).
    out_r = output.reshape(N, C, HW)
    tgt_r = target.reshape(N, C, HW)
    hw_lane_pad = hw_rows * _LANES
    if hw_lane_pad != HW:
        # TODO(synk): a lane mask on the last row would avoid this copy too.
        pad = [(0, 0), (0, 0), (0, hw_lane_pad - HW)]
        out_r = jnp.pad(out_r, pad)
        tgt_r = jnp.pad(tgt_r, pad)
    out_r = out_r.reshape(N, C, hw_rows, _LANES)
    tgt_r = tgt_r.reshape(N, C, hw_rows, _LANES)

    # Tile size: biggest hw-tile whose double-buffered input blocks
    # (2 inputs x 2 buffers) fit the pipeline-buffer budget.
    bytes_per_row = C * _LANES * itemsize
    rows_budget = pipeline_buffer_bytes // (4 * bytes_per_row)
    rows_budget = max(sub, (rows_budget // sub) * sub)
    rows_budget = min(rows_budget, max(sub, (max_rows_per_tile // sub) * sub))

    if hw_rows <= rows_budget:
        rows_per_tile = hw_rows        # single full-extent tile on the rows axis
        num_tiles = 1
        # Keep grid product >= 2 so a 2-TensorCore chip (v7x) gets balanced work.
        if N == 1 and hw_rows >= 2 * sub:
            rows_per_tile = _round_up(-(-hw_rows // 2), sub)
            num_tiles = -(-hw_rows // rows_per_tile)
    else:
        rows_per_tile = rows_budget
        num_tiles = -(-hw_rows // rows_per_tile)
    mask_rows = (num_tiles * rows_per_tile) != hw_rows
    out_rows = min(_OUT_ROWS, rows_per_tile)

    def idx_map(n, t):
        return (n, 0, t, 0)

    block_bytes = rows_per_tile * bytes_per_row
    if num_tiles >= 4 and block_bytes < (1 << 20):
        # Tiny blocks with many steps: deepen buffering so short DMAs stay
        # back-to-back and the per-step overhead is hidden.
        in_spec = pl.BlockSpec((None, C, rows_per_tile, _LANES), idx_map,
                               pipeline_mode=pl.Buffered(3))
    else:
        in_spec = pl.BlockSpec((None, C, rows_per_tile, _LANES), idx_map)

    kernel = functools.partial(_l2_partial_kernel, channels=C,
                               rows=rows_per_tile, out_rows=out_rows,
                               total_rows=hw_rows, mask_rows=mask_rows)

    partials = pl.pallas_call(
        kernel,
        out_shape=jax.ShapeDtypeStruct((N, num_tiles, out_rows, _LANES),
                                       jnp.float32),
        grid=(N, num_tiles),
        in_specs=[in_spec, in_spec],
        out_specs=pl.BlockSpec((None, None, out_rows, _LANES),
                               lambda n, t: (n, t, 0, 0)),
        compiler_params=pltpu.CompilerParams(
            dimension_semantics=("parallel", "parallel"),
            vmem_limit_bytes=32 * 1024 * 1024),
    )(out_r, tgt_r)

    mean_norm = jnp.sum(partials) / jnp.float32(N * HW)
    lossvalue = mean_norm   # L2
    epevalue = mean_norm    # EPE (same formula)
    return [lossvalue, epevalue]


if __name__ == "__main__":
    key = jax.random.PRNGKey(0)
    k1, k2 = jax.random.split(key)
    # Flow-like tensors: batch=2, channels=4, spatial=16x16 (NCHW, like PyTorch).
    output = jax.random.normal(k1, (2, 4, 16, 16), dtype=jnp.float32)
    target = jax.random.normal(k2, (2, 4, 16, 16), dtype=jnp.float32)

    lossvalue, epevalue = l2_loss(output, target)
    jax.block_until_ready(lossvalue)
    jax.block_until_ready(epevalue)

    # Cross-check against a pure-JAX reference of the PyTorch semantics.
    ref = jnp.mean(jnp.linalg.norm(output - target, ord=2, axis=1))
    assert jnp.allclose(lossvalue, ref, rtol=1e-5, atol=1e-5), (lossvalue, ref)
    assert jnp.allclose(epevalue, ref, rtol=1e-5, atol=1e-5), (epevalue, ref)

    # bf16 inputs are accepted directly (math still f32 in-kernel).
    loss_bf16, _ = l2_loss(output.astype(jnp.bfloat16), target.astype(jnp.bfloat16))
    jax.block_until_ready(loss_bf16)
    assert jnp.allclose(loss_bf16, ref, rtol=5e-2, atol=5e-2), (loss_bf16, ref)

    print("KERNEL_OK")
</pallas_src>

<mosaic_0001>
module attributes {stable_mosaic.version = 11 : i64} {
  func.func @_l2_partial_kernel(%arg0: i32, %arg1: i32, %arg2: memref<1x4x2x128xf32, #tpu.memory_space<vmem>>, %arg3: memref<1x4x2x128xf32, #tpu.memory_space<vmem>>, %arg4: memref<1x1x2x128xf32, #tpu.memory_space<vmem>>) attributes {dimension_semantics = [#tpu.dimension_semantics<parallel>, #tpu.dimension_semantics<parallel>], iteration_bounds = array<i64: 2, 1>, scalar_prefetch = 0 : i64, scratch_operands = 0 : i64, tpu.core_type = #tpu.core_type<tc>, window_params = [{transform_indices = @transform_0, window_bounds = array<i64: 1, 4, 2, 128>}, {transform_indices = @transform_1, window_bounds = array<i64: 1, 4, 2, 128>}, {transform_indices = @transform_2, window_bounds = array<i64: 1, 1, 2, 128>}]} {
    %c0 = arith.constant 0 : index
    %c0_0 = arith.constant 0 : index
    %c0_1 = arith.constant 0 : index
    %c0_2 = arith.constant 0 : index
    %0 = vector.load %arg2[%c0, %c0_0, %c0_1, %c0_2] : memref<1x4x2x128xf32, #tpu.memory_space<vmem>>, vector<1x1x2x128xf32>
    %1 = vector.shape_cast %0 : vector<1x1x2x128xf32> to vector<2x128xf32>
    %c0_3 = arith.constant 0 : index
    %c0_4 = arith.constant 0 : index
    %c0_5 = arith.constant 0 : index
    %c0_6 = arith.constant 0 : index
    %2 = vector.load %arg3[%c0_3, %c0_4, %c0_5, %c0_6] : memref<1x4x2x128xf32, #tpu.memory_space<vmem>>, vector<1x1x2x128xf32>
    %3 = vector.shape_cast %2 : vector<1x1x2x128xf32> to vector<2x128xf32>
    %4 = arith.subf %1, %3 : vector<2x128xf32>
    %5 = arith.mulf %4, %4 : vector<2x128xf32>
    %c0_7 = arith.constant 0 : index
    %c1 = arith.constant 1 : index
    %c0_8 = arith.constant 0 : index
    %c0_9 = arith.constant 0 : index
    %6 = vector.load %arg2[%c0_7, %c1, %c0_8, %c0_9] : memref<1x4x2x128xf32, #tpu.memory_space<vmem>>, vector<1x1x2x128xf32>
    %7 = vector.shape_cast %6 : vector<1x1x2x128xf32> to vector<2x128xf32>
    %c0_10 = arith.constant 0 : index
    %c1_11 = arith.constant 1 : index
    %c0_12 = arith.constant 0 : index
    %c0_13 = arith.constant 0 : index
    %8 = vector.load %arg3[%c0_10, %c1_11, %c0_12, %c0_13] : memref<1x4x2x128xf32, #tpu.memory_space<vmem>>, vector<1x1x2x128xf32>
    %9 = vector.shape_cast %8 : vector<1x1x2x128xf32> to vector<2x128xf32>
    %10 = arith.subf %7, %9 : vector<2x128xf32>
    %11 = arith.mulf %10, %10 : vector<2x128xf32>
    %12 = arith.addf %5, %11 : vector<2x128xf32>
    %c0_14 = arith.constant 0 : index
    %c2 = arith.constant 2 : index
    %c0_15 = arith.constant 0 : index
    %c0_16 = arith.constant 0 : index
    %13 = vector.load %arg2[%c0_14, %c2, %c0_15, %c0_16] : memref<1x4x2x128xf32, #tpu.memory_space<vmem>>, vector<1x1x2x128xf32>
    %14 = vector.shape_cast %13 : vector<1x1x2x128xf32> to vector<2x128xf32>
    %c0_17 = arith.constant 0 : index
    %c2_18 = arith.constant 2 : index
    %c0_19 = arith.constant 0 : index
    %c0_20 = arith.constant 0 : index
    %15 = vector.load %arg3[%c0_17, %c2_18, %c0_19, %c0_20] : memref<1x4x2x128xf32, #tpu.memory_space<vmem>>, vector<1x1x2x128xf32>
    %16 = vector.shape_cast %15 : vector<1x1x2x128xf32> to vector<2x128xf32>
    %17 = arith.subf %14, %16 : vector<2x128xf32>
    %18 = arith.mulf %17, %17 : vector<2x128xf32>
    %19 = arith.addf %12, %18 : vector<2x128xf32>
    %c0_21 = arith.constant 0 : index
    %c3 = arith.constant 3 : index
    %c0_22 = arith.constant 0 : index
    %c0_23 = arith.constant 0 : index
    %20 = vector.load %arg2[%c0_21, %c3, %c0_22, %c0_23] : memref<1x4x2x128xf32, #tpu.memory_space<vmem>>, vector<1x1x2x128xf32>
    %21 = vector.shape_cast %20 : vector<1x1x2x128xf32> to vector<2x128xf32>
    %c0_24 = arith.constant 0 : index
    %c3_25 = arith.constant 3 : index
    %c0_26 = arith.constant 0 : index
    %c0_27 = arith.constant 0 : index
    %22 = vector.load %arg3[%c0_24, %c3_25, %c0_26, %c0_27] : memref<1x4x2x128xf32, #tpu.memory_space<vmem>>, vector<1x1x2x128xf32>
    %23 = vector.shape_cast %22 : vector<1x1x2x128xf32> to vector<2x128xf32>
    %24 = arith.subf %21, %23 : vector<2x128xf32>
    %25 = arith.mulf %24, %24 : vector<2x128xf32>
    %26 = arith.addf %19, %25 : vector<2x128xf32>
    %27 = math.sqrt %26 : vector<2x128xf32>
    %c0_28 = arith.constant 0 : index
    %c0_29 = arith.constant 0 : index
    %c0_30 = arith.constant 0 : index
    %c0_31 = arith.constant 0 : index
    %28 = vector.load %arg4[%c0_28, %c0_29, %c0_30, %c0_31] : memref<1x1x2x128xf32, #tpu.memory_space<vmem>>, vector<1x1x2x128xf32>
    %29 = vector.shape_cast %28 : vector<1x1x2x128xf32> to vector<2x128xf32>
    %30 = vector.shape_cast %27 : vector<2x128xf32> to vector<1x1x2x128xf32>
    tpu.vector_store %arg4[%c0_28, %c0_29, %c0_30, %c0_31], %30 {strides = array<i32>} : memref<1x1x2x128xf32, #tpu.memory_space<vmem>>, vector<1x1x2x128xf32>,
    return
  }
  func.func @transform_0(%arg0: i32, %arg1: i32) -> (i32, i32, i32, i32) {
    %c0_i32 = arith.constant 0 : i32
    %c0_i32_0 = arith.constant 0 : i32
    %c0_i32_1 = arith.constant 0 : i32
    return %arg0, %c0_i32, %arg1, %c0_i32_0 : i32, i32, i32, i32
  }
  func.func @transform_1(%arg0: i32, %arg1: i32) -> (i32, i32, i32, i32) {
    %c0_i32 = arith.constant 0 : i32
    %c0_i32_0 = arith.constant 0 : i32
    %c0_i32_1 = arith.constant 0 : i32
    return %arg0, %c0_i32, %arg1, %c0_i32_0 : i32, i32, i32, i32
  }
  func.func @transform_2(%arg0: i32, %arg1: i32) -> (i32, i32, i32, i32) {
    %c0_i32 = arith.constant 0 : i32
    %c0_i32_0 = arith.constant 0 : i32
    %c0_i32_1 = arith.constant 0 : i32
    return %arg0, %arg1, %c0_i32, %c0_i32_0 : i32, i32, i32, i32
  }
}

</mosaic_0001>

<llo_original>
// kernel: tpu_custom_call.1
$region0: #{tpu_custom_call.1}
  #allocation0 [shape = 'u32[]', space=smem, size = 0x4, offset = 0x4, fixed_abs, tag = 'smem constant byte address 0x4 - core index']
  #allocation1 [shape = 'u32[144,128]{1,0:T(1,128)}', space=vmem, size = 0x12000, scoped, tag = 'internal scratch']
  %s0 = inlined_call_operand.hbm [shape: f32[2,4,2,128], index: 0, kind: input, shape index: {}]
  %s1 = inlined_call_operand.hbm [shape: f32[2,4,2,128], index: 1, kind: input, shape index: {}]
  %s2 = inlined_call_operand.hbm [shape: f32[2,1,2,128], index: 2, kind: output, shape index: {}]
  %s3 = sld [smem:[#allocation0]]
  $region49: #{tpu_custom_call.1} parent=0
    _
  %s5 = ssub.s32 1, %s3
  %s6 = scalar_select 0, %s5, %s3
  $region1: #{tpu_custom_call.1} parent=0
    #allocation2 [shape = 'u8[8192]{0}', space=vmem, size = 0x2000, scoped, tag = 'input window, operand 0']
    #allocation3 [shape = 's32[2]{0}', space=sflag, size = 0x8, scoped, tag = 'scoped memory for tpu_custom_call.1']
    #allocation4 [shape = 's32[2]{0}', space=sflag, size = 0x8, scoped, tag = 'scoped memory for tpu_custom_call.1']
    #allocation5 [shape = 'u8[8192]{0}', space=vmem, size = 0x2000, scoped, tag = 'input window, operand 1']
    #allocation6 [shape = 's32[2]{0}', space=sflag, size = 0x8, scoped, tag = 'scoped memory for tpu_custom_call.1']
    #allocation7 [shape = 'u8[2048]{0}', space=vmem, size = 0x800, scoped, tag = 'output window, operand 0']
    %7 = vsyncpa [#allocation3], 0
    %s8 = scalar_lea.sflag [#allocation3], 1
    %9 = vsyncpa %s8, 0
    %10 = vsyncpa [#allocation6], 0
    %s11 = scalar_lea.sflag [#allocation6], 1
    %12 = vsyncpa %s11, 0
    %13 = vsyncpa [#allocation4], 0
    %s14 = scalar_lea.sflag [#allocation4], 1
    %15 = vsyncpa %s14, 0
    loop: start=0, step=1, limit=4
    $region2: #{tpu_custom_call.1} parent=1 // loop_pre_header
      _
    $region3: #{tpu_custom_call.1} parent=1 // loop_header
      %s17 = sphi 0, %s21
      %p18 = scmp.ge.s32.totalorder %s17, 4
      %s24 = sphi 0, %s36
      %s25 = sphi 0, %s32
      %s26 = sphi 0, %s24
      %s27 = sphi 0, %s25
      %s28 = sphi 0, %s26
      %s29 = sphi 0, %s27
      %s41 = sphi 0, %s43
      %s44 = sphi 0, %s41
      %s45 = sphi 0, %s44
      %s61 = sphi 0, %s45
      %s69 = sphi 0, %s71
      %s72 = sphi 0, %s69
      %s73 = sphi 0, %s72
      %s89 = sphi 0, %s73
      %s97 = sphi 0, %s99
      %s100 = sphi 0, %s97
      %s101 = sphi 0, %s100
      %s117 = sphi 0, %s101
    $region4: #{tpu_custom_call.1} parent=1 // loop_header_branch
      %20 = sbr.rel (%p18) target = $region8
    $region5: #{tpu_custom_call.1} parent=1 // loop_body
      %s22 = ssub.s32 %s17, 1
      %s23 = ssub.s32 %s17, 2
      %s30 = sadd.s32 1, %s25
      %p31 = scmp.ge.s32.totalorder %s30, 1
      %s32 = scalar_select %p31, 0, %s30
      %s33 = sadd.s32 1, %s24
      %s34 = scalar_select %p31, %s33, %s24
      %p35 = scmp.ge.s32.totalorder %s34, 2
      %s36 = scalar_select %p35, 0, %s34
      %s37 = ssub.s32 %s24, %s36
      %s38 = ssub.s32 %s25, %s32
      %s39 = sor.u32 %s37, %s38
      %p40 = scmp.eq.s32.totalorder %s39, 0
      %s42 = sadd.s32 %s41, 1
      %s43 = scalar_select %p40, %s41, %s42
      %p46 = pneg %p40
      %p47 = scmp.eq.s32.totalorder %s17, 1
      %p48 = por %p46, %p47
      %p49 = scmp.ne.s32.totalorder %s41, %s44
      %p50 = scmp.eq.s32.totalorder %s17, 0
      %p51 = por %p49, %p50
      %p52 = scmp.ne.s32.totalorder %s41, %s44
      %p53 = scmp.eq.s32.totalorder %s22, 1
      %p54 = por %p52, %p53
      %p55 = scmp.ne.s32.totalorder %s44, %s45
      %p56 = scmp.eq.s32.totalorder %s22, 0
      %p57 = por %p55, %p56
      %p58 = scmp.ne.s32.totalorder %s44, %s45
      %p59 = scmp.eq.s32.totalorder %s23, 1
      %p60 = por %p58, %p59
      %p62 = scmp.ne.s32.totalorder %s45, %s61
      %p63 = scmp.eq.s32.totalorder %s23, 0
      %p64 = por %p62, %p63
      %s65 = ssub.s32 %s24, %s36
      %s66 = ssub.s32 %s25, %s32
      %s67 = sor.u32 %s65, %s66
      %p68 = scmp.eq.s32.totalorder %s67, 0
      %s70 = sadd.s32 %s69, 1
      %s71 = scalar_select %p68, %s69, %s70
      %p74 = pneg %p68
      %p75 = scmp.eq.s32.totalorder %s17, 1
      %p76 = por %p74, %p75
      %p77 = scmp.ne.s32.totalorder %s69, %s72
      %p78 = scmp.eq.s32.totalorder %s17, 0
      %p79 = por %p77, %p78
      %p80 = scmp.ne.s32.totalorder %s69, %s72
      %p81 = scmp.eq.s32.totalorder %s22, 1
      %p82 = por %p80, %p81
      %p83 = scmp.ne.s32.totalorder %s72, %s73
      %p84 = scmp.eq.s32.totalorder %s22, 0
      %p85 = por %p83, %p84
      %p86 = scmp.ne.s32.totalorder %s72, %s73
      %p87 = scmp.eq.s32.totalorder %s23, 1
      %p88 = por %p86, %p87
      %p90 = scmp.ne.s32.totalorder %s73, %s89
      %p91 = scmp.eq.s32.totalorder %s23, 0
      %p92 = por %p90, %p91
      %s93 = ssub.s32 %s24, %s36
      %s94 = ssub.s32 %s25, %s32
      %s95 = sor.u32 %s93, %s94
      %p96 = scmp.eq.s32.totalorder %s95, 0
      %s98 = sadd.s32 %s97, 1
      %s99 = scalar_select %p96, %s97, %s98
      %p102 = pneg %p96
      %p103 = scmp.eq.s32.totalorder %s17, 1
      %p104 = por %p102, %p103
      %p105 = scmp.ne.s32.totalorder %s97, %s100
      %p106 = scmp.eq.s32.totalorder %s17, 0
      %p107 = por %p105, %p106
      %p108 = scmp.ne.s32.totalorder %s97, %s100
      %p109 = scmp.eq.s32.totalorder %s22, 1
      %p110 = por %p108, %p109
      %p111 = scmp.ne.s32.totalorder %s100, %s101
      %p112 = scmp.eq.s32.totalorder %s22, 0
      %p113 = por %p111, %p112
      %p114 = scmp.ne.s32.totalorder %s100, %s101
      %p115 = scmp.eq.s32.totalorder %s23, 1
      %p116 = por %p114, %p115
      %p118 = scmp.ne.s32.totalorder %s101, %s117
      %p119 = scmp.eq.s32.totalorder %s23, 0
      %p120 = por %p118, %p119
      %p121 = scmp.le.s32.totalorder 1, %s17
      %p122 = scmp.lt.s32.totalorder %s17, 3
      %p123 = pnand %p121, %p122
      %p124 = pneg %p123
      // Predicated region
      $region9: #{tpu_custom_call.1} parent=5 // pred_check
        _
      $region10: #{tpu_custom_call.1} parent=5 // pred_check_branch
        %126 = sbr.rel (%p123) target = $region12
      $region11: #{tpu_custom_call.1} parent=5 // pred_region
        %s127 = ssub.s32 %s17, 1
      $region12: #{tpu_custom_call.1} parent=5 // pred_fallthru
        _
      %p128 = scmp.lt.s32.totalorder %s17, 2
      // Predicated region
      $region13: #{tpu_custom_call.1} parent=5 // pred_check
        %p129 = pneg %p128
      $region14: #{tpu_custom_call.1} parent=5 // pred_check_branch
        %131 = sbr.rel (%p129) target = $region16
      $region15: #{tpu_custom_call.1} parent=5 // pred_region
        // Predicated region
        $region17: #{tpu_custom_call.1} parent=15 // pred_check
          %p132 = pneg %p51
        $region18: #{tpu_custom_call.1} parent=15 // pred_check_branch
          %134 = sbr.rel (%p132) target = $region20
        $region19: #{tpu_custom_call.1} parent=15 // pred_region
          %s135 = sand.u32 %s41, 1
          %s136 = scalar_lea.sflag [#allocation3], %s135
          %s137 = sand.u32 %s41, 1
          %s138 = smul.addr %s137, 8
          %s139 = scalar_lea.vmem [#allocation2], %s138
          %s141 = ssub.s32 128, 128
          %142 = vsyncadd %s136, %s141
          %s143 = smul.addr %s24, 4
          %s144 = sadd.s32 %s25, %s143
          %s145 = smul.addr %s144, 32
          %s146 = scalar_lea.hbm %s0, %s145
          %s147 = sshll.u32 %s139, 4
          %s148 = int_to_ptr.vmem [resolvable:$true] %s147
          %153 = dma.hbm_to_vmem [thread:$0]  %s146, 128, %s148, %s136, 32, 32, 2
        $region20: #{tpu_custom_call.1} parent=15 // pred_fallthru
          _
        // Predicated region
        $region21: #{tpu_custom_call.1} parent=15 // pred_check
          %p154 = pneg %p79
        $region22: #{tpu_custom_call.1} parent=15 // pred_check_branch
          %156 = sbr.rel (%p154) target = $region24
        $region23: #{tpu_custom_call.1} parent=15 // pred_region
          %s157 = sand.u32 %s69, 1
          %s158 = scalar_lea.sflag [#allocation6], %s157
          %s159 = sand.u32 %s69, 1
          %s160 = smul.addr %s159, 8
          %s161 = scalar_lea.vmem [#allocation5], %s160
          %s163 = ssub.s32 128, 128
          %164 = vsyncadd %s158, %s163
          %s165 = smul.addr %s24, 4
          %s166 = sadd.s32 %s25, %s165
          %s167 = smul.addr %s166, 32
          %s168 = scalar_lea.hbm %s1, %s167
          %s169 = sshll.u32 %s161, 4
          %s170 = int_to_ptr.vmem [resolvable:$true] %s169
          %175 = dma.hbm_to_vmem [thread:$0]  %s168, 128, %s170, %s158, 32, 32, 2
        $region24: #{tpu_custom_call.1} parent=15 // pred_fallthru
          _
      $region16: #{tpu_custom_call.1} parent=5 // pred_fallthru
        _
      %p176 = scmp.le.s32.totalorder 1, %s17
      %p177 = scmp.lt.s32.totalorder %s17, 3
      %p178 = pnand %p176, %p177
      %p179 = pneg %p178
      // Predicated region
      $region25: #{tpu_custom_call.1} parent=5 // pred_check
        _
      $region26: #{tpu_custom_call.1} parent=5 // pred_check_branch
        %181 = sbr.rel (%p178) target = $region28
      $region27: #{tpu_custom_call.1} parent=5 // pred_region
        %s182 = ssub.s32 %s17, 1
        %s183 = sand.u32 %s44, 1
        %s184 = scalar_lea.sflag [#allocation3], %s183
        %s185 = sand.u32 %s44, 1
        %s186 = smul.addr %s185, 8
        %s187 = scalar_lea.vmem [#allocation2], %s186
        // Predicated region
        $region29: #{tpu_custom_call.1} parent=27 // pred_check
          %p188 = pneg %p57
        $region30: #{tpu_custom_call.1} parent=27 // pred_check_branch
          %190 = sbr.rel (%p188) target = $region32
        $region31: #{tpu_custom_call.1} parent=27 // pred_region
          %191 = dma.done %s184, 128
        $region32: #{tpu_custom_call.1} parent=27 // pred_fallthru
          _
        %s192 = sand.u32 %s72, 1
        %s193 = scalar_lea.sflag [#allocation6], %s192
        %s194 = sand.u32 %s72, 1
        %s195 = smul.addr %s194, 8
        %s196 = scalar_lea.vmem [#allocation5], %s195
        // Predicated region
        $region33: #{tpu_custom_call.1} parent=27 // pred_check
          %p197 = pneg %p85
        $region34: #{tpu_custom_call.1} parent=27 // pred_check_branch
          %199 = sbr.rel (%p197) target = $region36
        $region35: #{tpu_custom_call.1} parent=27 // pred_region
          %200 = dma.done %s193, 128
        $region36: #{tpu_custom_call.1} parent=27 // pred_fallthru
          _
        %s201 = sand.u32 %s44, 1
        %s202 = scalar_lea.sflag [#allocation3], %s201
        %s203 = sand.u32 %s44, 1
        %s204 = smul.addr %s203, 8
        %s205 = scalar_lea.vmem [#allocation2], %s204
        %p206 = pneg %p57
        %p207 = pneg %p54
        %s208 = sand.u32 %s72, 1
        %s209 = scalar_lea.sflag [#allocation6], %s208
        %s210 = sand.u32 %s72, 1
        %s211 = smul.addr %s210, 8
        %s212 = scalar_lea.vmem [#allocation5], %s211
        %p213 = pneg %p85
        %p214 = pneg %p82
        %p215 = pneg %p113
        %p216 = pneg %p110
        %s217 = sand.u32 %s100, 1
        %s218 = scalar_lea.sflag [#allocation4], %s217
        %s219 = sand.u32 %s100, 1
        %s220 = smul.addr %s219, 2
        %s221 = scalar_lea.vmem [#allocation7], %s220
        %v222 = vld [vmem:[%s187] sm:$0x3]
        %v223 = vld [vmem:[%s196] sm:$0x3]
        %v224 = vsub.f32 %v222, %v223
        %v225 = vmul.f32 %v224, %v224
        %s226 = scalar_lea.vmem %s187, 2 [#allocation2]
        %v227 = vld [vmem:[%s226] sm:$0x3]
        %s228 = scalar_lea.vmem %s196, 2 [#allocation5]
        %v229 = vld [vmem:[%s228] sm:$0x3]
        %v230 = vsub.f32 %v227, %v229
        %v231 = vmul.f32 %v230, %v230
        %v232 = vadd.f32 %v225, %v231
        %s233 = scalar_lea.vmem %s187, 4 [#allocation2]
        %v234 = vld [vmem:[%s233] sm:$0x3]
        %s235 = scalar_lea.vmem %s196, 4 [#allocation5]
        %v236 = vld [vmem:[%s235] sm:$0x3]
        %v237 = vsub.f32 %v234, %v236
        %v238 = vmul.f32 %v237, %v237
        %v239 = vadd.f32 %v232, %v238
        %s240 = scalar_lea.vmem %s187, 6 [#allocation2]
        %v241 = vld [vmem:[%s240] sm:$0x3]
        %s242 = scalar_lea.vmem %s196, 6 [#allocation5]
        %v243 = vld [vmem:[%s242] sm:$0x3]
        %v244 = vsub.f32 %v241, %v243
        %v245 = vmul.f32 %v244, %v244
        %v246 = vadd.f32 %v239, %v245
        %v247 = vrsqrt.pop %v246
        %v248 = vmul.f32 %v246, %v247
        %vm249 = vcmp.eq.f32.partialorder %v246, inf
        %v250 = vsel %vm249, %v246, %v248
        %vm251 = vcmp.eq.f32.partialorder %v246, 0.0
        %v252 = vand.u32 %v246, 2147483648
        %v253 = vsel %vm251, %v252, %v250
        %254 = vst [vmem:[%s221] sm:$0x3] %v253
        %s255 = sand.u32 %s100, 1
        %s256 = scalar_lea.sflag [#allocation4], %s255
        %s257 = sand.u32 %s100, 1
        %s258 = smul.addr %s257, 2
        %s259 = scalar_lea.vmem [#allocation7], %s258
        // Predicated region
        $region37: #{tpu_custom_call.1} parent=27 // pred_check
          %p260 = pneg %p110
        $region38: #{tpu_custom_call.1} parent=27 // pred_check_branch
          %262 = sbr.rel (%p260) target = $region40
        $region39: #{tpu_custom_call.1} parent=27 // pred_region
          %s264 = ssub.s32 32, 32
          %265 = vsyncadd %s256, %s264
          %s266 = sadd.s32 %s27, %s26
          %s267 = smul.addr %s266, 32
          %s268 = scalar_lea.hbm %s2, %s267
          %s270 = sshll.u32 %s259, 4
          %s271 = int_to_ptr.vmem [resolvable:$true] %s270
          %273 = dma.vmem_to_hbm [thread:$0]  %s271, 32, %s268, %s256
        $region40: #{tpu_custom_call.1} parent=27 // pred_fallthru
          _
      $region28: #{tpu_custom_call.1} parent=5 // pred_fallthru
        _
      %p274 = scmp.le.s32.totalorder 2, %s17
      // Predicated region
      $region41: #{tpu_custom_call.1} parent=5 // pred_check
        %p275 = pneg %p274
      $region42: #{tpu_custom_call.1} parent=5 // pred_check_branch
        %277 = sbr.rel (%p275) target = $region44
      $region43: #{tpu_custom_call.1} parent=5 // pred_region
        %s278 = ssub.s32 %s17, 2
        // Predicated region
        $region45: #{tpu_custom_call.1} parent=43 // pred_check
          %p279 = pneg %p116
        $region46: #{tpu_custom_call.1} parent=43 // pred_check_branch
          %281 = sbr.rel (%p279) target = $region48
        $region47: #{tpu_custom_call.1} parent=43 // pred_region
          %s282 = sand.u32 %s101, 1
          %s283 = scalar_lea.sflag [#allocation4], %s282
          %s284 = sand.u32 %s101, 1
          %s285 = smul.addr %s284, 2
          %s286 = scalar_lea.vmem [#allocation7], %s285
          %287 = dma.done %s283, 32
        $region48: #{tpu_custom_call.1} parent=43 // pred_fallthru
          _
      $region44: #{tpu_custom_call.1} parent=5 // pred_fallthru
        _
    $region6: #{tpu_custom_call.1} parent=1 // loop_footer
      %s21 = sadd.s32 1, %s17
    $region7: #{tpu_custom_call.1} parent=1 // loop_footer_branch
      %16 = sbr.rel target = $region3
    $region8: #{tpu_custom_call.1} parent=1 // loop_exit
      _
    %288 = vsyncpa [#allocation3], 1
    %s289 = scalar_lea.sflag [#allocation3], 1
    %290 = vsyncpa %s289, 1
    %291 = vsyncpa [#allocation6], 1
    %s292 = scalar_lea.sflag [#allocation6], 1
    %293 = vsyncpa %s292, 1
    %294 = vsyncpa [#allocation4], 1
    %s295 = scalar_lea.sflag [#allocation4], 1
    %296 = vsyncpa %s295, 1

</llo_original>
